<compile_context>
chip_gen: v5e
topology: v5e:2x2
jax: 0.10.0
libtpu: 0.0.40
codegen_flags: <defaults>
</compile_context>

<pallas_src>
import functools

import jax
import jax.numpy as jnp
from jax.experimental import pallas as pl
from jax.experimental.pallas import tpu as pltpu

_LANE = 128
_MAX_ROW_TILE = 1024  # 512 KiB per f32 buffer; ~86% of HBM roofline regime.


def _row_tile(n_rows, min_itemsize):
    """Dtype-aware row tile with a cdiv grid; aims for >= 2 grid steps."""
    min_tile = max(8, 32 // int(min_itemsize))  # 8 (f32) / 16 (bf16) / 32 (i8)
    if n_rows <= min_tile:
        return n_rows  # single block equal to full extent (always legal)
    half = (n_rows + 1) // 2                      # >= 2 steps for 2 v7x TCs
    half = ((half + min_tile - 1) // min_tile) * min_tile
    return min(_MAX_ROW_TILE, half)


def _focal_math(x, t, alpha, gamma):
    """Elementwise focal-loss math in f32. x, t already f32."""
    abs_x = jnp.abs(x)
    e = jnp.exp(-abs_x)                    # shared: sigmoid + stable BCE
    r = 1.0 / (1.0 + e)                    # sigmoid(|x|)
    p = jnp.where(x >= 0.0, r, e * r)      # sigmoid(x)
    # alpha_weight = t*alpha + (1-t)*(1-alpha) == (1-alpha) + t*(2*alpha-1)
    alpha_w = (1.0 - alpha) + t * (2.0 * alpha - 1.0)
    # pt = t*(1-p) + (1-t)*p == p + t - 2*t*p
    pt = p + t - 2.0 * t * p
    g = float(gamma)
    if g == 2.0:
        pt_g = pt * pt                     # avoid exp/log lowering of power
    elif g == 0.0:
        pt_g = jnp.ones_like(pt)
    elif g.is_integer() and g > 0.0:
        pt_g = pt
        for _ in range(int(g) - 1):
            pt_g = pt_g * pt
    else:
        pt_g = jnp.power(pt, g)
    # Stable sigmoid cross entropy with logits: max(x,0) - x*t + log1p(e)
    bce = jnp.maximum(x, 0.0) - x * t + jnp.log1p(e)
    return alpha_w * pt_g * bce


def _focal_kernel_compact_w(x_ref, t_ref, w_ref, o_ref, *, alpha, gamma,
                            n_classes):
    """Lane-dense path with per-anchor weights.

    x/t/o blocks: (tr, 128); w block: (tr, 128 // n_classes).
    The anchor->class expansion is a tiny matmul on the idle MXU, so no
    in-kernel reshape/relayout is needed and the weight HBM stream is 1/C
    of the logits stream.
    """
    x = x_ref[...].astype(jnp.float32)
    t = t_ref[...].astype(jnp.float32)
    w = w_ref[...].astype(jnp.float32)                      # (tr, K)
    lanes = x.shape[-1]
    k = lanes // n_classes
    # Expansion matrix E[a, l] = 1 iff lane l belongs to anchor a.
    lane_id = jax.lax.broadcasted_iota(jnp.int32, (k, lanes), 1)
    anchor_id = jax.lax.broadcasted_iota(jnp.int32, (k, lanes), 0)
    lo = anchor_id * n_classes
    expand = ((lane_id >= lo) & (lane_id < lo + n_classes)).astype(jnp.float32)
    w_full = jnp.dot(w, expand, preferred_element_type=jnp.float32)  # (tr,128)
    loss = _focal_math(x, t, alpha, gamma)
    o_ref[...] = (loss * w_full).astype(o_ref.dtype)


def _focal_kernel_full_w(x_ref, t_ref, w_ref, o_ref, *, alpha, gamma):
    """Lane-dense path with pre-broadcast weights (padded fallback)."""
    x = x_ref[...].astype(jnp.float32)
    t = t_ref[...].astype(jnp.float32)
    w = w_ref[...].astype(jnp.float32)
    o_ref[...] = (_focal_math(x, t, alpha, gamma) * w).astype(o_ref.dtype)


def _run_lane_dense(kernel, x2, t2, w2, out_dtype, tr):
    n_rows = x2.shape[0]
    grid = (pl.cdiv(n_rows, tr),)
    wk = w2.shape[1]
    return pl.pallas_call(
        kernel,
        out_shape=jax.ShapeDtypeStruct((n_rows, _LANE), out_dtype),
        grid_spec=pltpu.PrefetchScalarGridSpec(
            num_scalar_prefetch=0,
            grid=grid,
            in_specs=[
                pl.BlockSpec((tr, _LANE), lambda r: (r, 0)),
                pl.BlockSpec((tr, _LANE), lambda r: (r, 0)),
                pl.BlockSpec((tr, wk), lambda r: (r, 0)),
            ],
            out_specs=pl.BlockSpec((tr, _LANE), lambda r: (r, 0)),
        ),
        compiler_params=pltpu.CompilerParams(
            dimension_semantics=("parallel",)),
    )(x2, t2, w2)


def sigmoid_focal_classification_loss(logits, target, weights, *,
                                      gamma: float = 2.0,
                                      alpha: float = 0.25):
    """
    Args:
      logits:  (B, A, C) float — predicted logits.
      target:  (B, A, C) float — one-hot targets.
      weights: (B, A) or (B, A, 1) float — anchor-wise weights.

    Returns:
      (B, A, C) weighted focal loss, no reduction (matches the torch module).
    """
    B, A, C = logits.shape
    assert target.shape == (B, A, C)
    if weights.ndim == 3:
        assert weights.shape == (B, A, 1)
        weights = weights.reshape(B, A)
    assert weights.shape == (B, A)

    total = B * A * C
    out_dtype = logits.dtype
    min_item = min(jnp.dtype(a.dtype).itemsize for a in (logits, target, weights))

    if C <= _LANE and _LANE % C == 0 and (B * A) % (_LANE // C) == 0:
        # ---- Fast path: lane-dense, compact per-anchor weight stream -----
        k = _LANE // C
        n_rows = total // _LANE
        x2 = logits.reshape(n_rows, _LANE)
        t2 = target.reshape(n_rows, _LANE)
        w2 = weights.reshape(n_rows, k)          # one value per anchor
        tr = _row_tile(n_rows, min_item)
        kernel = functools.partial(_focal_kernel_compact_w,
                                   alpha=alpha, gamma=gamma, n_classes=C)
        out2 = _run_lane_dense(kernel, x2, t2, w2, out_dtype, tr)
        return out2.reshape(B, A, C)

    # ---- General path: broadcast weights, flatten, pad to lane-dense -----
    # TODO(synk): if C were a multiple of 128, weights could stay per-anchor
    # here too (sublane broadcast); not worth special-casing for class heads.
    wf = jnp.broadcast_to(weights[:, :, None], (B, A, C)).reshape(-1)
    xf = logits.reshape(-1)
    tf_ = target.reshape(-1)
    granule = _LANE * 8                       # keep n_rows a multiple of 8
    padded = ((total + granule - 1) // granule) * granule
    pad = padded - total
    if pad:
        xf = jnp.pad(xf, (0, pad))
        tf_ = jnp.pad(tf_, (0, pad))
        wf = jnp.pad(wf, (0, pad))
    n_rows = padded // _LANE
    x2 = xf.reshape(n_rows, _LANE)
    t2 = tf_.reshape(n_rows, _LANE)
    w2 = wf.reshape(n_rows, _LANE)
    tr = _row_tile(n_rows, min_item)
    kernel = functools.partial(_focal_kernel_full_w, alpha=alpha, gamma=gamma)
    out2 = _run_lane_dense(kernel, x2, t2, w2, out_dtype, tr)
    return out2.reshape(-1)[:total].reshape(B, A, C)


def _reference(logits, target, weights, gamma=2.0, alpha=0.25):
    # Pure-JAX mirror of the PyTorch forward, for sanity checking.
    pred_sigmoid = jax.nn.sigmoid(logits)
    alpha_weight = target * alpha + (1 - target) * (1 - alpha)
    pt = target * (1.0 - pred_sigmoid) + (1.0 - target) * pred_sigmoid
    focal_weight = alpha_weight * jnp.power(pt, gamma)
    bce = jnp.maximum(logits, 0.0) - logits * target + jnp.log1p(
        jnp.exp(-jnp.abs(logits)))
    loss = focal_weight * bce
    return loss * weights[..., None]


if __name__ == "__main__":
    key = jax.random.PRNGKey(0)
    k1, k2, k3, k4, k5, k6 = jax.random.split(key, 6)

    # Case 1: fast path (128 % C == 0, compact weight stream), f32.
    B, A, C = 2, 128, 8
    logits = jax.random.normal(k1, (B, A, C), dtype=jnp.float32) * 2.0
    cls_idx = jax.random.randint(k2, (B, A), 0, C)
    target = jax.nn.one_hot(cls_idx, C, dtype=jnp.float32)
    weights = jax.random.uniform(k3, (B, A), dtype=jnp.float32)

    out = sigmoid_focal_classification_loss(logits, target, weights)
    out = jax.block_until_ready(out)
    ref = _reference(logits, target, weights)
    assert out.shape == (B, A, C)
    assert jnp.allclose(out, ref, atol=1e-5, rtol=1e-5)

    # Case 2: general padded path (B*A*C not a multiple of 128), f32.
    B2, A2, C2 = 2, 50, 5
    logits2 = jax.random.normal(k4, (B2, A2, C2), dtype=jnp.float32) * 2.0
    cls_idx2 = jax.random.randint(k5, (B2, A2), 0, C2)
    target2 = jax.nn.one_hot(cls_idx2, C2, dtype=jnp.float32)
    weights2 = jax.random.uniform(k6, (B2, A2), dtype=jnp.float32)

    out2 = sigmoid_focal_classification_loss(logits2, target2, weights2)
    out2 = jax.block_until_ready(out2)
    ref2 = _reference(logits2, target2, weights2)
    assert out2.shape == (B2, A2, C2)
    assert jnp.allclose(out2, ref2, atol=1e-5, rtol=1e-5)

    # Case 3: bf16 storage (f32 math inside the kernel), fast path.
    logits3 = logits.astype(jnp.bfloat16)
    target3 = target.astype(jnp.bfloat16)
    weights3 = weights.astype(jnp.bfloat16)
    out3 = sigmoid_focal_classification_loss(logits3, target3, weights3)
    out3 = jax.block_until_ready(out3)
    ref3 = _reference(logits3.astype(jnp.float32), target3.astype(jnp.float32),
                      weights3.astype(jnp.float32))
    assert out3.dtype == jnp.bfloat16 and out3.shape == (B, A, C)
    assert jnp.allclose(out3.astype(jnp.float32), ref3, atol=2e-2, rtol=2e-2)

    print("KERNEL_OK")
</pallas_src>

<mosaic_0001>
module attributes {stable_mosaic.version = 11 : i64} {
  func.func @_focal_kernel_compact_w(%arg0: i32, %arg1: memref<8x128xf32, #tpu.memory_space<vmem>>, %arg2: memref<8x128xf32, #tpu.memory_space<vmem>>, %arg3: memref<8x16xf32, #tpu.memory_space<vmem>>, %arg4: memref<8x128xf32, #tpu.memory_space<vmem>>) attributes {dimension_semantics = [#tpu.dimension_semantics<parallel>], iteration_bounds = array<i64: 2>, scalar_prefetch = 0 : i64, scratch_operands = 0 : i64, tpu.core_type = #tpu.core_type<tc>, window_params = [{transform_indices = @transform_0, window_bounds = array<i64: 8, 128>}, {transform_indices = @transform_1, window_bounds = array<i64: 8, 128>}, {transform_indices = @transform_2, window_bounds = array<i64: 8, 16>}, {transform_indices = @transform_3, window_bounds = array<i64: 8, 128>}]} {
    %c0 = arith.constant 0 : index
    %c0_0 = arith.constant 0 : index
    %0 = vector.load %arg1[%c0, %c0_0] : memref<8x128xf32, #tpu.memory_space<vmem>>, vector<8x128xf32>
    %c0_1 = arith.constant 0 : index
    %c0_2 = arith.constant 0 : index
    %1 = vector.load %arg2[%c0_1, %c0_2] : memref<8x128xf32, #tpu.memory_space<vmem>>, vector<8x128xf32>
    %c0_3 = arith.constant 0 : index
    %c0_4 = arith.constant 0 : index
    %2 = vector.load %arg3[%c0_3, %c0_4] : memref<8x16xf32, #tpu.memory_space<vmem>>, vector<8x16xf32>
    %3 = tpu.iota {dimensions = array<i32: 1>} : vector<16x128xi32>
    %4 = tpu.iota {dimensions = array<i32: 0>} : vector<16x128xi32>
    %c8_i32 = arith.constant 8 : i32
    %5 = vector.broadcast %c8_i32 : i32 to vector<16x128xi32>
    %6 = arith.muli %4, %5 : vector<16x128xi32>
    %7 = arith.cmpi sge, %3, %6 : vector<16x128xi32>
    %c8_i32_5 = arith.constant 8 : i32
    %8 = vector.broadcast %c8_i32_5 : i32 to vector<16x128xi32>
    %9 = arith.addi %6, %8 : vector<16x128xi32>
    %10 = arith.cmpi slt, %3, %9 : vector<16x128xi32>
    %11 = arith.andi %7, %10 : vector<16x128xi1>
    %12 = arith.extui %11 : vector<16x128xi1> to vector<16x128xi32>
    %13 = arith.sitofp %12 : vector<16x128xi32> to vector<16x128xf32>
    %cst = arith.constant dense<0.000000e+00> : vector<8x128xf32>
    %14 = tpu.matmul %2, %13, %cst {dimension_numbers = #tpu.dot_dimension_numbers<[1], [0], [0], [1], [0, 0, 1, 1], [], []>} : vector<8x16xf32>, vector<16x128xf32>, vector<8x128xf32> -> vector<8x128xf32>
    %15 = math.absf %0 : vector<8x128xf32>
    %cst_6 = arith.constant 0.000000e+00 : f32
    %16 = vector.broadcast %cst_6 : f32 to vector<8x128xf32>
    %17 = arith.subf %16, %15 : vector<8x128xf32>
    %18 = math.exp %17 : vector<8x128xf32>
    %cst_7 = arith.constant 1.000000e+00 : f32
    %19 = vector.broadcast %cst_7 : f32 to vector<8x128xf32>
    %20 = arith.addf %19, %18 : vector<8x128xf32>
    %cst_8 = arith.constant 1.000000e+00 : f32
    %21 = vector.broadcast %cst_8 : f32 to vector<8x128xf32>
    %22 = arith.divf %21, %20 : vector<8x128xf32>
    %cst_9 = arith.constant 0.000000e+00 : f32
    %23 = vector.broadcast %cst_9 : f32 to vector<8x128xf32>
    %24 = arith.cmpf oge, %0, %23 : vector<8x128xf32>
    %25 = arith.mulf %18, %22 : vector<8x128xf32>
    %26 = arith.select %24, %22, %25 : vector<8x128xi1>, vector<8x128xf32>
    %cst_10 = arith.constant -5.000000e-01 : f32
    %27 = vector.broadcast %cst_10 : f32 to vector<8x128xf32>
    %28 = arith.mulf %1, %27 : vector<8x128xf32>
    %cst_11 = arith.constant 7.500000e-01 : f32
    %29 = vector.broadcast %cst_11 : f32 to vector<8x128xf32>
    %30 = arith.addf %29, %28 : vector<8x128xf32>
    %31 = arith.addf %26, %1 : vector<8x128xf32>
    %cst_12 = arith.constant 2.000000e+00 : f32
    %32 = vector.broadcast %cst_12 : f32 to vector<8x128xf32>
    %33 = arith.mulf %32, %1 : vector<8x128xf32>
    %34 = arith.mulf %33, %26 : vector<8x128xf32>
    %35 = arith.subf %31, %34 : vector<8x128xf32>
    %36 = arith.mulf %35, %35 : vector<8x128xf32>
    %cst_13 = arith.constant 0.000000e+00 : f32
    %37 = vector.broadcast %cst_13 : f32 to vector<8x128xf32>
    %38 = arith.maximumf %0, %37 : vector<8x128xf32>
    %39 = arith.mulf %0, %1 : vector<8x128xf32>
    %40 = arith.subf %38, %39 : vector<8x128xf32>
    %41 = math.log1p %18 : vector<8x128xf32>
    %42 = arith.addf %40, %41 : vector<8x128xf32>
    %43 = arith.mulf %30, %36 : vector<8x128xf32>
    %44 = arith.mulf %43, %42 : vector<8x128xf32>
    %45 = arith.mulf %44, %14 : vector<8x128xf32>
    %c0_14 = arith.constant 0 : index
    %c0_15 = arith.constant 0 : index
    %46 = vector.load %arg4[%c0_14, %c0_15] : memref<8x128xf32, #tpu.memory_space<vmem>>, vector<8x128xf32>
    tpu.vector_store %arg4[%c0_14, %c0_15], %45 {strides = array<i32>} : memref<8x128xf32, #tpu.memory_space<vmem>>, vector<8x128xf32>,
    return
  }
  func.func @transform_0(%arg0: i32) -> (i32, i32) {
    %c0_i32 = arith.constant 0 : i32
    %c0_i32_0 = arith.constant 0 : i32
    return %arg0, %c0_i32 : i32, i32
  }
  func.func @transform_1(%arg0: i32) -> (i32, i32) {
    %c0_i32 = arith.constant 0 : i32
    %c0_i32_0 = arith.constant 0 : i32
    return %arg0, %c0_i32 : i32, i32
  }
  func.func @transform_2(%arg0: i32) -> (i32, i32) {
    %c0_i32 = arith.constant 0 : i32
    %c0_i32_0 = arith.constant 0 : i32
    return %arg0, %c0_i32 : i32, i32
  }
  func.func @transform_3(%arg0: i32) -> (i32, i32) {
    %c0_i32 = arith.constant 0 : i32
    %c0_i32_0 = arith.constant 0 : i32
    return %arg0, %c0_i32 : i32, i32
  }
}

</mosaic_0001>

<llo_original>
// kernel: tpu_custom_call.1
$region0: #{tpu_custom_call.1}
  #allocation0 [shape = 'u32[]', space=smem, size = 0x4, offset = 0x4, fixed_abs, tag = 'smem constant byte address 0x4 - core index']
  #allocation1 [shape = 'u32[72,128]{1,0:T(1,128)}', space=vmem, size = 0x9000, scoped, tag = 'internal scratch']
  %s0 = inlined_call_operand.hbm [shape: f32[16,128], index: 0, kind: input, shape index: {}]
  %s1 = inlined_call_operand.hbm [shape: f32[16,128], index: 1, kind: input, shape index: {}]
  %s2 = inlined_call_operand.hbm [shape: f32[16,16], index: 2, kind: input, shape index: {}]
  %s3 = inlined_call_operand.hbm [shape: f32[16,128], index: 3, kind: output, shape index: {}]
  %s4 = sld [smem:[#allocation0]]
  $region57: #{tpu_custom_call.1} parent=0
    _
  %s6 = ssub.s32 1, %s4
  %s7 = scalar_select 0, %s6, %s4
  $region1: #{tpu_custom_call.1} parent=0
    #allocation2 [shape = 'u8[8192]{0}', space=vmem, size = 0x2000, scoped, tag = 'input window, operand 0']
    #allocation3 [shape = 's32[2]{0}', space=sflag, size = 0x8, scoped, tag = 'scoped memory for tpu_custom_call.1']
    #allocation4 [shape = 's32[2]{0}', space=sflag, size = 0x8, scoped, tag = 'scoped memory for tpu_custom_call.1']
    #allocation5 [shape = 'u8[8192]{0}', space=vmem, size = 0x2000, scoped, tag = 'input window, operand 1']
    #allocation6 [shape = 's32[2]{0}', space=sflag, size = 0x8, scoped, tag = 'scoped memory for tpu_custom_call.1']
    #allocation7 [shape = 'u8[8192]{0}', space=vmem, size = 0x2000, scoped, tag = 'input window, operand 2']
    #allocation8 [shape = 'u8[8192]{0}', space=vmem, size = 0x2000, scoped, tag = 'output window, operand 0']
    %8 = vsyncpa [#allocation3], 0
    %s9 = scalar_lea.sflag [#allocation3], 1
    %10 = vsyncpa %s9, 0
    %11 = vsyncpa [#allocation6], 0
    %s12 = scalar_lea.sflag [#allocation6], 1
    %13 = vsyncpa %s12, 0
    %14 = vsyncpa [#allocation4], 0
    %s15 = scalar_lea.sflag [#allocation4], 1
    %16 = vsyncpa %s15, 0
    loop: start=0, step=1, limit=4
    $region2: #{tpu_custom_call.1} parent=1 // loop_pre_header
      _
    $region3: #{tpu_custom_call.1} parent=1 // loop_header
      %s18 = sphi 0, %s22
      %p19 = scmp.ge.s32.totalorder %s18, 4
      %s28 = sphi 0, %s30
      %s31 = sphi 0, %s28
      %s32 = sphi 0, %s31
      %s48 = sphi 0, %s32
      %s54 = sphi 0, %s56
      %s57 = sphi 0, %s54
      %s58 = sphi 0, %s57
      %s74 = sphi 0, %s58
      %s80 = sphi 0, %s82
      %s83 = sphi 0, %s80
      %s84 = sphi 0, %s83
      %s100 = sphi 0, %s84
      %s106 = sphi 0, %s108
      %s109 = sphi 0, %s106
      %s110 = sphi 0, %s109
      %s126 = sphi 0, %s110
    $region4: #{tpu_custom_call.1} parent=1 // loop_header_branch
      %21 = sbr.rel (%p19) target = $region8
    $region5: #{tpu_custom_call.1} parent=1 // loop_body
      %s23 = ssub.s32 %s18, 1
      %s24 = ssub.s32 %s18, 2
      %s25 = sadd.s32 %s18, 1
      %s26 = ssub.s32 %s18, %s25
      %p27 = scmp.eq.s32.totalorder %s26, 0
      %s29 = sadd.s32 %s28, 1
      %s30 = scalar_select %p27, %s28, %s29
      %p33 = pneg %p27
      %p34 = scmp.eq.s32.totalorder %s18, 1
      %p35 = por %p33, %p34
      %p36 = scmp.ne.s32.totalorder %s28, %s31
      %p37 = scmp.eq.s32.totalorder %s18, 0
      %p38 = por %p36, %p37
      %p39 = scmp.ne.s32.totalorder %s28, %s31
      %p40 = scmp.eq.s32.totalorder %s23, 1
      %p41 = por %p39, %p40
      %p42 = scmp.ne.s32.totalorder %s31, %s32
      %p43 = scmp.eq.s32.totalorder %s23, 0
      %p44 = por %p42, %p43
      %p45 = scmp.ne.s32.totalorder %s31, %s32
      %p46 = scmp.eq.s32.totalorder %s24, 1
      %p47 = por %p45, %p46
      %p49 = scmp.ne.s32.totalorder %s32, %s48
      %p50 = scmp.eq.s32.totalorder %s24, 0
      %p51 = por %p49, %p50
      %s52 = ssub.s32 %s18, %s25
      %p53 = scmp.eq.s32.totalorder %s52, 0
      %s55 = sadd.s32 %s54, 1
      %s56 = scalar_select %p53, %s54, %s55
      %p59 = pneg %p53
      %p60 = scmp.eq.s32.totalorder %s18, 1
      %p61 = por %p59, %p60
      %p62 = scmp.ne.s32.totalorder %s54, %s57
      %p63 = scmp.eq.s32.totalorder %s18, 0
      %p64 = por %p62, %p63
      %p65 = scmp.ne.s32.totalorder %s54, %s57
      %p66 = scmp.eq.s32.totalorder %s23, 1
      %p67 = por %p65, %p66
      %p68 = scmp.ne.s32.totalorder %s57, %s58
      %p69 = scmp.eq.s32.totalorder %s23, 0
      %p70 = por %p68, %p69
      %p71 = scmp.ne.s32.totalorder %s57, %s58
      %p72 = scmp.eq.s32.totalorder %s24, 1
      %p73 = por %p71, %p72
      %p75 = scmp.ne.s32.totalorder %s58, %s74
      %p76 = scmp.eq.s32.totalorder %s24, 0
      %p77 = por %p75, %p76
      %s78 = ssub.s32 %s18, %s25
      %p79 = scmp.eq.s32.totalorder %s78, 0
      %s81 = sadd.s32 %s80, 1
      %s82 = scalar_select %p79, %s80, %s81
      %p85 = pneg %p79
      %p86 = scmp.eq.s32.totalorder %s18, 1
      %p87 = por %p85, %p86
      %p88 = scmp.ne.s32.totalorder %s80, %s83
      %p89 = scmp.eq.s32.totalorder %s18, 0
      %p90 = por %p88, %p89
      %p91 = scmp.ne.s32.totalorder %s80, %s83
      %p92 = scmp.eq.s32.totalorder %s23, 1
      %p93 = por %p91, %p92
      %p94 = scmp.ne.s32.totalorder %s83, %s84
      %p95 = scmp.eq.s32.totalorder %s23, 0
      %p96 = por %p94, %p95
      %p97 = scmp.ne.s32.totalorder %s83, %s84
      %p98 = scmp.eq.s32.totalorder %s24, 1
      %p99 = por %p97, %p98
      %p101 = scmp.ne.s32.totalorder %s84, %s100
      %p102 = scmp.eq.s32.totalorder %s24, 0
      %p103 = por %p101, %p102
      %s104 = ssub.s32 %s18, %s25
      %p105 = scmp.eq.s32.totalorder %s104, 0
      %s107 = sadd.s32 %s106, 1
      %s108 = scalar_select %p105, %s106, %s107
      %p111 = pneg %p105
      %p112 = scmp.eq.s32.totalorder %s18, 1
      %p113 = por %p111, %p112
      %p114 = scmp.ne.s32.totalorder %s106, %s109
      %p115 = scmp.eq.s32.totalorder %s18, 0
      %p116 = por %p114, %p115
      %p117 = scmp.ne.s32.totalorder %s106, %s109
      %p118 = scmp.eq.s32.totalorder %s23, 1
      %p119 = por %p117, %p118
      %p120 = scmp.ne.s32.totalorder %s109, %s110
      %p121 = scmp.eq.s32.totalorder %s23, 0
      %p122 = por %p120, %p121
      %p123 = scmp.ne.s32.totalorder %s109, %s110
      %p124 = scmp.eq.s32.totalorder %s24, 1
      %p125 = por %p123, %p124
      %p127 = scmp.ne.s32.totalorder %s110, %s126
      %p128 = scmp.eq.s32.totalorder %s24, 0
      %p129 = por %p127, %p128
      %p130 = scmp.le.s32.totalorder 1, %s18
      %p131 = scmp.lt.s32.totalorder %s18, 3
      %p132 = pnand %p130, %p131
      %p133 = pneg %p132
      // Predicated region
      $region9: #{tpu_custom_call.1} parent=5 // pred_check
        _
      $region10: #{tpu_custom_call.1} parent=5 // pred_check_branch
        %135 = sbr.rel (%p132) target = $region12
      $region11: #{tpu_custom_call.1} parent=5 // pred_region
        %s136 = ssub.s32 %s18, 1
      $region12: #{tpu_custom_call.1} parent=5 // pred_fallthru
        _
      %p137 = scmp.lt.s32.totalorder %s18, 2
      // Predicated region
      $region13: #{tpu_custom_call.1} parent=5 // pred_check
        %p138 = pneg %p137
      $region14: #{tpu_custom_call.1} parent=5 // pred_check_branch
        %140 = sbr.rel (%p138) target = $region16
      $region15: #{tpu_custom_call.1} parent=5 // pred_region
        // Predicated region
        $region17: #{tpu_custom_call.1} parent=15 // pred_check
          %p141 = pneg %p38
        $region18: #{tpu_custom_call.1} parent=15 // pred_check_branch
          %143 = sbr.rel (%p141) target = $region20
        $region19: #{tpu_custom_call.1} parent=15 // pred_region
          %s144 = sand.u32 %s28, 1
          %s145 = scalar_lea.sflag [#allocation3], %s144
          %s146 = sand.u32 %s28, 1
          %s147 = smul.addr %s146, 8
          %s148 = scalar_lea.vmem [#allocation2], %s147
          %150 = vsyncadd %s145, 0
          %s151 = smul.addr %s18, 8
          %s152 = scalar_lea.hbm %s0, %s151
          %s154 = sshll.u32 %s152, 4
          %s155 = int_to_ptr.hbm [resolvable:$true] %s154
          %s156 = sshll.u32 %s148, 4
          %s157 = int_to_ptr.vmem [resolvable:$true] %s156
          %159 = dma.hbm_to_vmem [thread:$0]  %s155, 128, %s157, %s145
        $region20: #{tpu_custom_call.1} parent=15 // pred_fallthru
          _
        // Predicated region
        $region21: #{tpu_custom_call.1} parent=15 // pred_check
          %p160 = pneg %p64
        $region22: #{tpu_custom_call.1} parent=15 // pred_check_branch
          %162 = sbr.rel (%p160) target = $region24
        $region23: #{tpu_custom_call.1} parent=15 // pred_region
          %s163 = sand.u32 %s18, 1
          %s164 = scalar_lea.sflag [#allocation6], %s163
          %s165 = sand.u32 %s54, 1
          %s166 = smul.addr %s165, 8
          %s167 = scalar_lea.vmem [#allocation5], %s166
          %169 = vsyncadd %s164, 0
          %s170 = smul.addr %s18, 8
          %s171 = scalar_lea.hbm %s1, %s170
          %s173 = sshll.u32 %s171, 4
          %s174 = int_to_ptr.hbm [resolvable:$true] %s173
          %s175 = sshll.u32 %s167, 4
          %s176 = int_to_ptr.vmem [resolvable:$true] %s175
          %178 = dma.hbm_to_vmem [thread:$0]  %s174, 128, %s176, %s164
        $region24: #{tpu_custom_call.1} parent=15 // pred_fallthru
          _
        // Predicated region
        $region25: #{tpu_custom_call.1} parent=15 // pred_check
          %p179 = pneg %p90
        $region26: #{tpu_custom_call.1} parent=15 // pred_check_branch
          %181 = sbr.rel (%p179) target = $region28
        $region27: #{tpu_custom_call.1} parent=15 // pred_region
          %s182 = sand.u32 %s18, 1
          %s183 = scalar_lea.sflag [#allocation6], %s182
          %s184 = sand.u32 %s80, 1
          %s185 = smul.addr %s184, 8
          %s186 = scalar_lea.vmem [#allocation7], %s185
          %188 = vsyncadd %s183, 0
          %s189 = smul.addr %s18, 8
          %s190 = scalar_lea.hbm %s2, %s189
          %s192 = sshll.u32 %s190, 4
          %s193 = int_to_ptr.hbm [resolvable:$true] %s192
          %s194 = sshll.u32 %s186, 4
          %s195 = int_to_ptr.vmem [resolvable:$true] %s194
          %197 = dma.hbm_to_vmem [thread:$0]  %s193, 128, %s195, %s183
        $region28: #{tpu_custom_call.1} parent=15 // pred_fallthru
          _
      $region16: #{tpu_custom_call.1} parent=5 // pred_fallthru
        _
      %p198 = scmp.le.s32.totalorder 1, %s18
      %p199 = scmp.lt.s32.totalorder %s18, 3
      %p200 = pnand %p198, %p199
      %p201 = pneg %p200
      // Predicated region
      $region29: #{tpu_custom_call.1} parent=5 // pred_check
        _
      $region30: #{tpu_custom_call.1} parent=5 // pred_check_branch
        %203 = sbr.rel (%p200) target = $region32
      $region31: #{tpu_custom_call.1} parent=5 // pred_region
        %s204 = ssub.s32 %s18, 1
        %s205 = sand.u32 %s31, 1
        %s206 = scalar_lea.sflag [#allocation3], %s205
        %s207 = sand.u32 %s31, 1
        %s208 = smul.addr %s207, 8
        %s209 = scalar_lea.vmem [#allocation2], %s208
        // Predicated region
        $region33: #{tpu_custom_call.1} parent=31 // pred_check
          %p210 = pneg %p44
        $region34: #{tpu_custom_call.1} parent=31 // pred_check_branch
          %212 = sbr.rel (%p210) target = $region36
        $region35: #{tpu_custom_call.1} parent=31 // pred_region
          %214 = dma.done %s206, 128
        $region36: #{tpu_custom_call.1} parent=31 // pred_fallthru
          _
        %s215 = sand.u32 %s23, 1
        %s216 = scalar_lea.sflag [#allocation6], %s215
        %s217 = sand.u32 %s57, 1
        %s218 = smul.addr %s217, 8
        %s219 = scalar_lea.vmem [#allocation5], %s218
        // Predicated region
        $region37: #{tpu_custom_call.1} parent=31 // pred_check
          %p220 = pneg %p70
        $region38: #{tpu_custom_call.1} parent=31 // pred_check_branch
          %222 = sbr.rel (%p220) target = $region40
        $region39: #{tpu_custom_call.1} parent=31 // pred_region
          %224 = dma.done %s216, 128
        $region40: #{tpu_custom_call.1} parent=31 // pred_fallthru
          _
        %s225 = sand.u32 %s23, 1
        %s226 = scalar_lea.sflag [#allocation6], %s225
        %s227 = sand.u32 %s83, 1
        %s228 = smul.addr %s227, 8
        %s229 = scalar_lea.vmem [#allocation7], %s228
        // Predicated region
        $region41: #{tpu_custom_call.1} parent=31 // pred_check
          %p230 = pneg %p96
        $region42: #{tpu_custom_call.1} parent=31 // pred_check_branch
          %232 = sbr.rel (%p230) target = $region44
        $region43: #{tpu_custom_call.1} parent=31 // pred_region
          %234 = dma.done %s226, 128
        $region44: #{tpu_custom_call.1} parent=31 // pred_fallthru
          _
        %s235 = sand.u32 %s31, 1
        %s236 = scalar_lea.sflag [#allocation3], %s235
        %s237 = sand.u32 %s31, 1
        %s238 = smul.addr %s237, 8
        %s239 = scalar_lea.vmem [#allocation2], %s238
        %p240 = pneg %p44
        %p241 = pneg %p41
        %s242 = sand.u32 %s23, 1
        %s243 = scalar_lea.sflag [#allocation6], %s242
        %s244 = sand.u32 %s57, 1
        %s245 = smul.addr %s244, 8
        %s246 = scalar_lea.vmem [#allocation5], %s245
        %p247 = pneg %p70
        %p248 = pneg %p67
        %s249 = sand.u32 %s23, 1
        %s250 = scalar_lea.sflag [#allocation6], %s249
        %s251 = sand.u32 %s83, 1
        %s252 = smul.addr %s251, 8
        %s253 = scalar_lea.vmem [#allocation7], %s252
        %p254 = pneg %p96
        %p255 = pneg %p93
        %p256 = pneg %p122
        %p257 = pneg %p119
        %s258 = sand.u32 %s109, 1
        %s259 = scalar_lea.sflag [#allocation4], %s258
        %s260 = sand.u32 %s109, 1
        %s261 = smul.addr %s260, 8
        %s262 = scalar_lea.vmem [#allocation8], %s261
        %v263 = vld [vmem:[%s209] sm:$0xff]
        %v264 = vld [vmem:[%s219] sm:$0xff]
        %v265 = vld [vmem:[%s229] sm:$0xff]
        %v266 = vlaneseq
        %v267 = vand.u32 %v266, 127
        %v268 = vlaneseq
        %v269 = vshrl.u32 %v268, 7
        %v270 = vadd.s32 %v269, 8
        %v271 = vmul.u32 %v269, 8
        %v272 = vmul.u32 %v270, 8
        %vm273 = vcmp.ge.s32.totalorder %v267, %v271
        %vm274 = vcmp.ge.s32.totalorder %v267, %v272
        %v275 = vadd.s32 %v271, 8
        %v276 = vadd.s32 %v272, 8
        %vm277 = vcmp.lt.s32.totalorder %v267, %v275
        %vm278 = vcmp.lt.s32.totalorder %v267, %v276
        %vm279 = vmand %vm273, %vm277
        %vm280 = vmand %vm274, %vm278
        %v281 = vsel %vm279, 1, 0
        %v282 = vsel %vm280, 1, 0
        %v283 = vcvt.s32.f32 %v281
        %v284 = vcvt.s32.f32 %v282
        %vm285 = vcmask 130048
        %v287 = vsel %vm285, %v265, 0
        %289 = vmatpush.msra.mxu0 0.0
        %290 = vmatpush.msra.mxu0 0.0
        %291 = vmatpush.msra.mxu0 0.0
        %292 = vmatpush.msra.mxu0 0.0
        %293 = vmatpush.msra.mxu0 0.0
        %294 = vmatpush.msra.mxu0 0.0
        %295 = vmatpush.msra.mxu0 0.0
        %296 = vmatpush.msra.mxu0 0.0
        %297 = vmatpush.msra.mxu0 0.0
        %298 = vmatpush.msra.mxu0 0.0
        %299 = vmatpush.msra.mxu0 0.0
        %300 = vmatpush.msra.mxu0 0.0
        %301 = vmatpush.msra.mxu0 0.0
        %302 = vmatpush.msra.mxu0 0.0
        %303 = vmatpush.msra.mxu0 %v284
        %304 = vmatpush.msra.mxu0 %v283
        %305 = vmatmul.f32.gmra.mxu0 %v287
        %v306 = vpop.f32.mrf.mxu0
        %v307 = vadd.f32 0.0, %v306
        %308 = vdwg.mxu0
        %v309 = vand.u32 2147483647, %v263
        %v310 = vsub.f32 0.0, %v309
        %v311 = vmul.f32 %v310, 1.442695
        %v312 = vpow.pop %v311
        %v313 = vadd.f32 %v312, 1.0
        %v314 = vrcp.pop %v313
        %v315 = vmul.f32 %v313, %v314
        %v316 = vsub.f32 1.0, %v315
        %v317 = vmul.f32 %v314, %v316
        %v318 = vadd.f32 %v314, %v317
        %vm319 = vweird.f32 %v313
        %vm320 = vweird.f32 %v314
        %vm321 = vmor %vm319, %vm320
        %v322 = vsel %vm321, %v314, %v318
        %v323 = vand.u32 2147483647, %v313
        %vm324 = vcmp.eq.f32.partialorder %v323, 8.507059e+37
        %v325 = vand.u32 %v313, 2147483648
        %v326 = vor.u32 1.1754944e-38, %v325
        %v327 = vsel %vm324, %v326, %v322
        %v328 = vmul.f32 1.0, %v327
        %vm329 = vcmp.ge.f32.partialorder %v263, 0.0
        %v330 = vmul.f32 %v312, %v328
        %v331 = vsel %vm329, %v328, %v330
        %v332 = vmul.f32 %v264, -0.5
        %v333 = vadd.f32 %v332, 0.75
        %v334 = vadd.f32 %v331, %v264
        %v335 = vmul.f32 %v264, 2.0
        %v336 = vmul.f32 %v335, %v331
        %v337 = vsub.f32 %v334, %v336
        %v338 = vmul.f32 %v337, %v337
        %v339 = vmax.f32 %v263, 0.0
        %v340 = vmul.f32 %v263, %v264
        %v341 = vsub.f32 %v339, %v340
        %v342 = vadd.f32 %v312, 1.0
        %v343 = vlog2.pop %v342
        %v344 = vmul.f32 %v343, 0.6931472
        %v345 = vmul.f32 -0.5, %v312
        %v346 = vadd.f32 %v345, 1.0
        %v347 = vmul.f32 %v346, %v312
        %v348 = vand.u32 2147483647, %v312
        %vm349 = vcmp.lt.f32.partialorder %v348, 0.0004427343
        %v350 = vsel %vm349, %v347, %v344
        %v351 = vadd.f32 %v341, %v350
        %v352 = vmul.f32 %v333, %v338
        %v353 = vmul.f32 %v352, %v351
        %v354 = vmul.f32 %v353, %v307
        %355 = vst [vmem:[%s262] sm:$0xff] %v354
        %s356 = sand.u32 %s109, 1
        %s357 = scalar_lea.sflag [#allocation4], %s356
        %s358 = sand.u32 %s109, 1
        %s359 = smul.addr %s358, 8
        %s360 = scalar_lea.vmem [#allocation8], %s359
        // Predicated region
        $region45: #{tpu_custom_call.1} parent=31 // pred_check
          %p361 = pneg %p119
        $region46: #{tpu_custom_call.1} parent=31 // pred_check_branch
          %363 = sbr.rel (%p361) target = $region48
        $region47: #{tpu_custom_call.1} parent=31 // pred_region
          %365 = vsyncadd %s357, 0
          %s366 = smul.addr %s23, 8
          %s367 = scalar_lea.hbm %s3, %s366
          %s369 = sshll.u32 %s360, 4
          %s370 = int_to_ptr.vmem [resolvable:$true] %s369
          %s371 = sshll.u32 %s367, 4
          %s372 = int_to_ptr.hbm [resolvable:$true] %s371
          %374 = dma.vmem_to_hbm [thread:$0]  %s370, 128, %s372, %s357
        $region48: #{tpu_custom_call.1} parent=31 // pred_fallthru
          _
      $region32: #{tpu_custom_call.1} parent=5 // pred_fallthru
        _
      %p375 = scmp.le.s32.totalorder 2, %s18
      // Predicated region
      $region49: #{tpu_custom_call.1} parent=5 // pred_check
        %p376 = pneg %p375
      $region50: #{tpu_custom_call.1} parent=5 // pred_check_branch
        %378 = sbr.rel (%p376) target = $region52
      $region51: #{tpu_custom_call.1} parent=5 // pred_region
        %s379 = ssub.s32 %s18, 2
        // Predicated region
        $region53: #{tpu_custom_call.1} parent=51 // pred_check
          %p380 = pneg %p125
        $region54: #{tpu_custom_call.1} parent=51 // pred_check_branch
          %382 = sbr.rel (%p380) target = $region56
        $region55: #{tpu_custom_call.1} parent=51 // pred_region
          %s383 = sand.u32 %s110, 1
          %s384 = scalar_lea.sflag [#allocation4], %s383
          %s385 = sand.u32 %s110, 1
          %s386 = smul.addr %s385, 8
          %s387 = scalar_lea.vmem [#allocation8], %s386
          %389 = dma.done %s384, 128
        $region56: #{tpu_custom_call.1} parent=51 // pred_fallthru
          _
      $region52: #{tpu_custom_call.1} parent=5 // pred_fallthru
        _
    $region6: #{tpu_custom_call.1} parent=1 // loop_footer
      %s22 = sadd.s32 1, %s18
    $region7: #{tpu_custom_call.1} parent=1 // loop_footer_branch
      %17 = sbr.rel target = $region3
    $region8: #{tpu_custom_call.1} parent=1 // loop_exit
      _
    %390 = vsyncpa [#allocation3], 1
    %s391 = scalar_lea.sflag [#allocation3], 1
    %392 = vsyncpa %s391, 1
    %393 = vsyncpa [#allocation6], 1
    %s394 = scalar_lea.sflag [#allocation6], 1
    %395 = vsyncpa %s394, 1
    %396 = vsyncpa [#allocation4], 1
    %s397 = scalar_lea.sflag [#allocation4], 1
    %398 = vsyncpa %s397, 1

</llo_original>
